<compile_context>
chip_gen: v7x
topology: tpu7x:2x2x1
jax: 0.10.0
libtpu: 0.0.40
codegen_flags: <defaults>
</compile_context>

<pallas_src>
import functools

import jax
import jax.numpy as jnp
from jax import lax
from jax.experimental import pallas as pl
from jax.experimental.pallas import tpu as pltpu


def _nll_kernel(x_ref, y_ref, picked_ref):
    """One (TN, TC) tile of X; accumulate picked X[n, y_n] across class tiles."""
    k = pl.program_id(1)
    tn, tc = x_ref.shape

    @pl.when(k == 0)
    def _init():
        picked_ref[...] = jnp.zeros_like(picked_ref)

    # Fold the class-tile offset into y (a (tn,1) op) instead of adding k*tc
    # to the full (tn,tc) iota.
    y_local = y_ref[...] - k * tc                       # (tn, 1)
    cls = lax.broadcasted_iota(jnp.int32, (tn, tc), 1)  # local class ids
    eq = cls == y_local                                 # (tn, tc); pad y=-1 never matches

    x = x_ref[...]
    # Select + lane-reduce in X's native dtype (exact: at most one nonzero per
    # row), then cast only the (tn,1) column for f32 accumulation.  Edge-block
    # garbage rows/classes are never selected, so they contribute exactly 0.
    picked_ref[...] += jnp.sum(
        jnp.where(eq, x, jnp.zeros_like(x)), axis=1, keepdims=True
    ).astype(jnp.float32)


def _round_up(a, b):
    return ((a + b - 1) // b) * b


def _choose_tiles(n, c, x_itemsize):
    # Class tile: full C when modest, else 2048-lane chunks (multiple of 128).
    tc = c if c <= 2048 else 2048
    # Row tile: biggest multiple of 8 keeping the double-buffered X block
    # within ~16 MiB (safe on v7x's 64 MiB/TC VMEM as well as v5e/v6e).
    x_budget = 16 * 1024 * 1024
    tn = x_budget // (2 * tc * x_itemsize)
    tn = max(8, min(1024, tn))
    # Keep >= 2 row blocks whenever N allows so the "parallel" row axis can be
    # sharded across both v7x TensorCores (no-op on single-TC v5e/v6e).
    tn = min(tn, max(8, _round_up(pl.cdiv(n, 2), 8)))
    tn = min(tn, _round_up(n, 8))
    tn = (tn // 8) * 8
    return tn, tc


@functools.partial(jax.jit, static_argnames=("reduction", "tn", "tc"))
def nll_loss(X, y, weight=None, reduction="mean", tn=None, tc=None):
    N, C = X.shape

    auto_tn, auto_tc = _choose_tiles(N, C, jnp.dtype(X.dtype).itemsize)
    tn = auto_tn if tn is None else tn
    tc = auto_tc if tc is None else tc

    nr = pl.cdiv(N, tn)
    nc = pl.cdiv(C, tc)
    n_pad = nr * tn

    # Only y is padded (N int32s). Sentinel -1 => padded rows select nothing.
    y_col = jnp.pad(y.astype(jnp.int32), (0, n_pad - N),
                    constant_values=-1).reshape(n_pad, 1)

    picked_col = pl.pallas_call(
        _nll_kernel,
        out_shape=jax.ShapeDtypeStruct((n_pad, 1), jnp.float32),  # X[n, y_n]
        grid_spec=pltpu.PrefetchScalarGridSpec(
            num_scalar_prefetch=0,
            grid=(nr, nc),
            in_specs=[
                pl.BlockSpec((tn, tc), lambda i, k: (i, k)),   # X tile
                pl.BlockSpec((tn, 1), lambda i, k: (i, 0)),    # y tile (resident over k)
            ],
            out_specs=pl.BlockSpec((tn, 1), lambda i, k: (i, 0)),  # picked logprob
        ),
        compiler_params=pltpu.CompilerParams(
            dimension_semantics=("parallel", "arbitrary"),
            vmem_limit_bytes=32 * 1024 * 1024,
        ),
    )(X, y_col)

    picked = picked_col[:N, 0]

    # Class-weight gather + sign flip are cheap O(N) work: do them in XLA.
    if weight is not None:
        w_y = weight.astype(jnp.float32)[y]
        per = -w_y * picked
        denom = jnp.sum(w_y)
    else:
        per = -picked
        denom = jnp.float32(N)

    if reduction == "mean":
        return jnp.sum(per) / denom
    if reduction == "sum":
        return jnp.sum(per)
    return per


class NLLLoss:
    """Pallas-backed equivalent of the PyTorch NLLLoss module (forward only)."""

    def __init__(self, weight=None, reduction="mean", fast=False):
        self.weight = weight
        self.reduction = reduction
        self.fast = fast  # fast/slow paths share identical semantics here

    def __call__(self, X, y):
        return nll_loss(X, y, weight=self.weight, reduction=self.reduction)


if __name__ == "__main__":
    key = jax.random.PRNGKey(0)
    k1, k2, k3 = jax.random.split(key, 3)

    # Small classification-style shapes.
    N, C = 64, 10
    logits = jax.random.normal(k1, (N, C), dtype=jnp.float32)
    X = jax.nn.log_softmax(logits, axis=-1)          # log-probabilities
    y = jax.random.randint(k2, (N,), 0, C, dtype=jnp.int32)
    weight = jax.random.uniform(k3, (C,), jnp.float32, 0.5, 1.5)

    # Pure-JAX reference.
    picked = X[jnp.arange(N), y]
    w_y = weight[y]
    ref_mean = jnp.sum(-w_y * picked) / jnp.sum(w_y)
    ref_sum = jnp.sum(-w_y * picked)
    ref_none = -w_y * picked

    loss_mean = jax.block_until_ready(NLLLoss(weight=weight, reduction="mean")(X, y))
    loss_sum = jax.block_until_ready(NLLLoss(weight=weight, reduction="sum")(X, y))
    loss_none = jax.block_until_ready(NLLLoss(weight=weight, reduction="none")(X, y))
    loss_default = jax.block_until_ready(NLLLoss()(X, y))  # no weight, mean

    assert jnp.allclose(loss_mean, ref_mean, atol=1e-5), (loss_mean, ref_mean)
    assert jnp.allclose(loss_sum, ref_sum, atol=1e-5), (loss_sum, ref_sum)
    assert jnp.allclose(loss_none, ref_none, atol=1e-5)
    assert jnp.allclose(loss_default, jnp.mean(-picked), atol=1e-5)

    # Exercise ragged row/class tiling (multi-block class reduction) with
    # forced small tiles: N % tn != 0 and C % tc != 0.
    N2, C2 = 70, 200
    k4, k5, k6 = jax.random.split(jax.random.PRNGKey(0), 3)
    X2 = jax.nn.log_softmax(jax.random.normal(k4, (N2, C2), jnp.float32), axis=-1)
    y2 = jax.random.randint(k5, (N2,), 0, C2, dtype=jnp.int32)
    w2 = jax.random.uniform(k6, (C2,), jnp.float32, 0.5, 1.5)
    ref2 = jnp.sum(-w2[y2] * X2[jnp.arange(N2), y2]) / jnp.sum(w2[y2])
    out2 = jax.block_until_ready(
        nll_loss(X2, y2, weight=w2, reduction="mean", tn=16, tc=128))
    assert jnp.allclose(out2, ref2, atol=1e-5), (out2, ref2)

    # bf16 input path: select/reduce runs in bf16 (exact, one nonzero per row).
    X3 = X2.astype(jnp.bfloat16)
    picked3 = X3[jnp.arange(N2), y2].astype(jnp.float32)
    ref3 = jnp.sum(-w2[y2] * picked3) / jnp.sum(w2[y2])
    out3 = jax.block_until_ready(
        nll_loss(X3, y2, weight=w2, reduction="mean", tn=16, tc=128))
    assert jnp.allclose(out3, ref3, atol=1e-5), (out3, ref3)

    print("KERNEL_OK")
</pallas_src>

<mosaic_0001>
module attributes {stable_mosaic.version = 11 : i64} {
  func.func @_nll_kernel(%arg0: i32, %arg1: i32, %arg2: memref<32x10xf32, #tpu.memory_space<vmem>>, %arg3: memref<32x1xi32, #tpu.memory_space<vmem>>, %arg4: memref<32x1xf32, #tpu.memory_space<vmem>>) attributes {dimension_semantics = [#tpu.dimension_semantics<parallel>, #tpu.dimension_semantics<arbitrary>], iteration_bounds = array<i64: 2, 1>, scalar_prefetch = 0 : i64, scratch_operands = 0 : i64, tpu.core_type = #tpu.core_type<tc>, window_params = [{transform_indices = @transform_0, window_bounds = array<i64: 32, 10>}, {transform_indices = @transform_1, window_bounds = array<i64: 32, 1>}, {transform_indices = @transform_2, window_bounds = array<i64: 32, 1>}]} {
    %c0_i32 = arith.constant 0 : i32
    %0 = arith.cmpi eq, %arg1, %c0_i32 : i32
    %1 = arith.extui %0 : i1 to i32
    %c0_i32_0 = arith.constant 0 : i32
    %2 = arith.cmpi ne, %1, %c0_i32_0 : i32
    scf.if %2 {
      %cst_9 = arith.constant 0.000000e+00 : f32
      %18 = vector.broadcast %cst_9 : f32 to vector<32x1xf32>
      %c0_10 = arith.constant 0 : index
      %c0_11 = arith.constant 0 : index
      %19 = vector.load %arg4[%c0_10, %c0_11] : memref<32x1xf32, #tpu.memory_space<vmem>>, vector<32x1xf32>
      tpu.vector_store %arg4[%c0_10, %c0_11], %18 {strides = array<i32>} : memref<32x1xf32, #tpu.memory_space<vmem>>, vector<32x1xf32>,
    } else {
    }
    %c0 = arith.constant 0 : index
    %c0_1 = arith.constant 0 : index
    %3 = vector.load %arg3[%c0, %c0_1] : memref<32x1xi32, #tpu.memory_space<vmem>>, vector<32x1xi32>
    %c10_i32 = arith.constant 10 : i32
    %4 = arith.muli %arg1, %c10_i32 : i32
    %5 = vector.broadcast %4 : i32 to vector<32x1xi32>
    %6 = arith.subi %3, %5 : vector<32x1xi32>
    %7 = tpu.iota {dimensions = array<i32: 1>} : vector<32x10xi32>
    %8 = vector.broadcast %6 : vector<32x1xi32> to vector<32x10xi32>
    %9 = arith.cmpi eq, %7, %8 : vector<32x10xi32>
    %c0_2 = arith.constant 0 : index
    %c0_3 = arith.constant 0 : index
    %10 = vector.load %arg2[%c0_2, %c0_3] : memref<32x10xf32, #tpu.memory_space<vmem>>, vector<32x10xf32>
    %c0_4 = arith.constant 0 : index
    %c0_5 = arith.constant 0 : index
    %11 = vector.load %arg4[%c0_4, %c0_5] : memref<32x1xf32, #tpu.memory_space<vmem>>, vector<32x1xf32>
    %cst = arith.constant 0.000000e+00 : f32
    %12 = vector.broadcast %cst : f32 to vector<32x10xf32>
    %13 = arith.select %9, %10, %12 : vector<32x10xi1>, vector<32x10xf32>
    %cst_6 = arith.constant dense<0.000000e+00> : vector<32xf32>
    %14 = vector.multi_reduction <add>, %13, %cst_6 [1] : vector<32x10xf32> to vector<32xf32>
    %15 = vector.shape_cast %14 : vector<32xf32> to vector<32x1xf32>
    %16 = arith.addf %11, %15 : vector<32x1xf32>
    %c0_7 = arith.constant 0 : index
    %c0_8 = arith.constant 0 : index
    %17 = vector.load %arg4[%c0_7, %c0_8] : memref<32x1xf32, #tpu.memory_space<vmem>>, vector<32x1xf32>
    tpu.vector_store %arg4[%c0_7, %c0_8], %16 {strides = array<i32>} : memref<32x1xf32, #tpu.memory_space<vmem>>, vector<32x1xf32>,
    return
  }
  func.func @transform_0(%arg0: i32, %arg1: i32) -> (i32, i32) {
    %c0_i32 = arith.constant 0 : i32
    return %arg0, %arg1 : i32, i32
  }
  func.func @transform_1(%arg0: i32, %arg1: i32) -> (i32, i32) {
    %c0_i32 = arith.constant 0 : i32
    %c0_i32_0 = arith.constant 0 : i32
    return %arg0, %c0_i32 : i32, i32
  }
  func.func @transform_2(%arg0: i32, %arg1: i32) -> (i32, i32) {
    %c0_i32 = arith.constant 0 : i32
    %c0_i32_0 = arith.constant 0 : i32
    return %arg0, %c0_i32 : i32, i32
  }
}

</mosaic_0001>

<llo_original>
// kernel: nll_loss.1
$region0: #{nll_loss.1}
  #allocation0 [shape = 'u32[]', space=smem, size = 0x4, offset = 0x4, fixed_abs, tag = 'smem constant byte address 0x4 - core index']
  #allocation1 [shape = 'u32[144,128]{1,0:T(1,128)}', space=vmem, size = 0x12000, scoped, tag = 'internal scratch']
  %s0 = inlined_call_operand.vmem [shape: f32[64,10], index: 0, kind: input, shape index: {}]
  %s1 = inlined_call_operand.vmem [shape: s32[64,1], index: 1, kind: input, shape index: {}]
  %s2 = inlined_call_operand.vmem [shape: f32[64,1], index: 2, kind: output, shape index: {}]
  %s3 = sld [smem:[#allocation0]]
  $region45: #{nll_loss.1} parent=0
    _
  %s5 = ssub.s32 1, %s3
  %s6 = scalar_select 0, %s5, %s3
  loop: start=0, step=1, limit=4
  $region2: #{nll_loss.1} parent=0 // loop_pre_header
    _
  $region3: #{nll_loss.1} parent=0 // loop_header
    %s8 = sphi 0, %s12
    %p9 = scmp.ge.s32.totalorder %s8, 4
    %s15 = sphi 0, %s27
    %s16 = sphi 0, %s23
    %s17 = sphi 0, %s15
    %s18 = sphi 0, %s16
    %s19 = sphi 0, %s17
    %s20 = sphi 0, %s18
    %s32 = sphi 0, %s34
    %s35 = sphi 0, %s32
    %s36 = sphi 0, %s35
    %s52 = sphi 0, %s36
    %s58 = sphi 0, %s60
    %s61 = sphi 0, %s58
    %s62 = sphi 0, %s61
    %s78 = sphi 0, %s62
    %s84 = sphi 0, %s86
    %s87 = sphi 0, %s84
    %s88 = sphi 0, %s87
    %s104 = sphi 0, %s88
  $region4: #{nll_loss.1} parent=0 // loop_header_branch
    %11 = sbr.rel (%p9) target = $region8
  $region5: #{nll_loss.1} parent=0 // loop_body
    %s13 = ssub.s32 %s8, 1
    %s14 = ssub.s32 %s8, 2
    %s21 = sadd.s32 1, %s16
    %p22 = scmp.ge.s32.totalorder %s21, 1
    %s23 = scalar_select %p22, 0, %s21
    %s24 = sadd.s32 1, %s15
    %s25 = scalar_select %p22, %s24, %s15
    %p26 = scmp.ge.s32.totalorder %s25, 2
    %s27 = scalar_select %p26, 0, %s25
    %s28 = ssub.s32 %s15, %s27
    %s29 = ssub.s32 %s16, %s23
    %s30 = sor.u32 %s28, %s29
    %p31 = scmp.eq.s32.totalorder %s30, 0
    %s33 = sadd.s32 %s32, 1
    %s34 = scalar_select %p31, %s32, %s33
    %p37 = pneg %p31
    %p38 = scmp.eq.s32.totalorder %s8, 1
    %p39 = por %p37, %p38
    %p40 = scmp.ne.s32.totalorder %s32, %s35
    %p41 = scmp.eq.s32.totalorder %s8, 0
    %p42 = por %p40, %p41
    %p43 = scmp.ne.s32.totalorder %s32, %s35
    %p44 = scmp.eq.s32.totalorder %s13, 1
    %p45 = por %p43, %p44
    %p46 = scmp.ne.s32.totalorder %s35, %s36
    %p47 = scmp.eq.s32.totalorder %s13, 0
    %p48 = por %p46, %p47
    %p49 = scmp.ne.s32.totalorder %s35, %s36
    %p50 = scmp.eq.s32.totalorder %s14, 1
    %p51 = por %p49, %p50
    %p53 = scmp.ne.s32.totalorder %s36, %s52
    %p54 = scmp.eq.s32.totalorder %s14, 0
    %p55 = por %p53, %p54
    %s56 = ssub.s32 %s15, %s27
    %p57 = scmp.eq.s32.totalorder %s56, 0
    %s59 = sadd.s32 %s58, 1
    %s60 = scalar_select %p57, %s58, %s59
    %p63 = pneg %p57
    %p64 = scmp.eq.s32.totalorder %s8, 1
    %p65 = por %p63, %p64
    %p66 = scmp.ne.s32.totalorder %s58, %s61
    %p67 = scmp.eq.s32.totalorder %s8, 0
    %p68 = por %p66, %p67
    %p69 = scmp.ne.s32.totalorder %s58, %s61
    %p70 = scmp.eq.s32.totalorder %s13, 1
    %p71 = por %p69, %p70
    %p72 = scmp.ne.s32.totalorder %s61, %s62
    %p73 = scmp.eq.s32.totalorder %s13, 0
    %p74 = por %p72, %p73
    %p75 = scmp.ne.s32.totalorder %s61, %s62
    %p76 = scmp.eq.s32.totalorder %s14, 1
    %p77 = por %p75, %p76
    %p79 = scmp.ne.s32.totalorder %s62, %s78
    %p80 = scmp.eq.s32.totalorder %s14, 0
    %p81 = por %p79, %p80
    %s82 = ssub.s32 %s15, %s27
    %p83 = scmp.eq.s32.totalorder %s82, 0
    %s85 = sadd.s32 %s84, 1
    %s86 = scalar_select %p83, %s84, %s85
    %p89 = pneg %p83
    %p90 = scmp.eq.s32.totalorder %s8, 1
    %p91 = por %p89, %p90
    %p92 = scmp.ne.s32.totalorder %s84, %s87
    %p93 = scmp.eq.s32.totalorder %s8, 0
    %p94 = por %p92, %p93
    %p95 = scmp.ne.s32.totalorder %s84, %s87
    %p96 = scmp.eq.s32.totalorder %s13, 1
    %p97 = por %p95, %p96
    %p98 = scmp.ne.s32.totalorder %s87, %s88
    %p99 = scmp.eq.s32.totalorder %s13, 0
    %p100 = por %p98, %p99
    %p101 = scmp.ne.s32.totalorder %s87, %s88
    %p102 = scmp.eq.s32.totalorder %s14, 1
    %p103 = por %p101, %p102
    %p105 = scmp.ne.s32.totalorder %s88, %s104
    %p106 = scmp.eq.s32.totalorder %s14, 0
    %p107 = por %p105, %p106
    %p108 = scmp.le.s32.totalorder 1, %s8
    %p109 = scmp.lt.s32.totalorder %s8, 3
    %p110 = pnand %p108, %p109
    %p111 = pneg %p110
    // Predicated region
    $region9: #{nll_loss.1} parent=5 // pred_check
      _
    $region10: #{nll_loss.1} parent=5 // pred_check_branch
      %113 = sbr.rel (%p110) target = $region12
    $region11: #{nll_loss.1} parent=5 // pred_region
      %s114 = ssub.s32 %s8, 1
    $region12: #{nll_loss.1} parent=5 // pred_fallthru
      _
    %p115 = scmp.lt.s32.totalorder %s8, 2
    // Predicated region
    $region13: #{nll_loss.1} parent=5 // pred_check
      %p116 = pneg %p115
    $region14: #{nll_loss.1} parent=5 // pred_check_branch
      %118 = sbr.rel (%p116) target = $region16
    $region15: #{nll_loss.1} parent=5 // pred_region
      // Predicated region
      $region17: #{nll_loss.1} parent=15 // pred_check
        %p119 = pneg %p42
      $region18: #{nll_loss.1} parent=15 // pred_check_branch
        %121 = sbr.rel (%p119) target = $region20
      $region19: #{nll_loss.1} parent=15 // pred_region
        %s122 = smul.u32 4, %s15
        %p123 = scmp.lt.s32.totalorder %s122, 7
        %s124 = scalar_select %p123, %s122, 7
        %p125 = scmp.lt.s32.totalorder %s16, 0
        %s126 = scalar_select %p125, %s16, 0
        %s127 = sadd.s32 %s126, %s124
        %s128 = smul.addr %s127, 8
        %s129 = scalar_lea.vmem %s0, %s128
        %s130 = smul.u32 4, %s15
      $region20: #{nll_loss.1} parent=15 // pred_fallthru
        _
      // Predicated region
      $region21: #{nll_loss.1} parent=15 // pred_check
        %p131 = pneg %p68
      $region22: #{nll_loss.1} parent=15 // pred_check_branch
        %133 = sbr.rel (%p131) target = $region24
      $region23: #{nll_loss.1} parent=15 // pred_region
        %s134 = smul.u32 4, %s15
        %p135 = scmp.lt.s32.totalorder %s134, 7
        %s136 = scalar_select %p135, %s134, 7
        %s137 = smul.addr %s136, 8
        %s138 = scalar_lea.vmem %s1, %s137
        %s139 = smul.u32 4, %s15
      $region24: #{nll_loss.1} parent=15 // pred_fallthru
        _
    $region16: #{nll_loss.1} parent=5 // pred_fallthru
      _
    %p140 = scmp.le.s32.totalorder 1, %s8
    %p141 = scmp.lt.s32.totalorder %s8, 3
    %p142 = pnand %p140, %p141
    %p143 = pneg %p142
    // Predicated region
    $region25: #{nll_loss.1} parent=5 // pred_check
      _
    $region26: #{nll_loss.1} parent=5 // pred_check_branch
      %145 = sbr.rel (%p142) target = $region28
    $region27: #{nll_loss.1} parent=5 // pred_region
      %s146 = ssub.s32 %s8, 1
      %s147 = smul.u32 4, %s17
      %p148 = scmp.lt.s32.totalorder %s147, 7
      %s149 = scalar_select %p148, %s147, 7
      %p150 = scmp.lt.s32.totalorder %s18, 0
      %s151 = scalar_select %p150, %s18, 0
      %s152 = sadd.s32 %s151, %s149
      %s153 = smul.addr %s152, 8
      %s154 = scalar_lea.vmem %s0, %s153
      %p155 = pneg %p48
      %p156 = pneg %p45
      %s157 = smul.u32 4, %s17
      %p158 = scmp.lt.s32.totalorder %s157, 7
      %s159 = scalar_select %p158, %s157, 7
      %s160 = smul.addr %s159, 8
      %s161 = scalar_lea.vmem %s1, %s160
      %p162 = pneg %p74
      %p163 = pneg %p71
      %p164 = pneg %p100
      %p165 = pneg %p97
      %s166 = smul.u32 4, %s17
      %p167 = scmp.lt.s32.totalorder %s166, 7
      %s168 = scalar_select %p167, %s166, 7
      %s169 = smul.addr %s168, 8
      %s170 = scalar_lea.vmem %s2, %s169
      %s171 = smul.u32 4, %s17
      %p172 = scmp.lt.s32.totalorder %s171, 7
      %s173 = scalar_select %p172, %s171, 7
      %p174 = scmp.lt.s32.totalorder %s18, 0
      %s175 = scalar_select %p174, %s18, 0
      %s176 = sadd.s32 %s175, %s173
      %s177 = smul.addr %s176, 8
      %s178 = scalar_lea.vmem %s0, %s177
      %s179 = smul.u32 4, %s17
      %s180 = smul.u32 4, %s17
      %p181 = scmp.lt.s32.totalorder %s180, 7
      %s182 = scalar_select %p181, %s180, 7
      %s183 = smul.addr %s182, 8
      %s184 = scalar_lea.vmem %s1, %s183
      %s185 = smul.u32 4, %s17
      %s186 = smul.u32 4, %s17
      %p187 = scmp.lt.s32.totalorder %s186, 7
      %s188 = scalar_select %p187, %s186, 7
      %s189 = smul.addr %s188, 8
      %s190 = scalar_lea.vmem %s2, %s189
      %s191 = smul.u32 4, %s17
      %p192 = scmp.eq.s32.totalorder %s18, 0
      // Predicated region
      $region29: #{nll_loss.1} parent=27 // pred_check
        %p193 = pneg %p192
      $region30: #{nll_loss.1} parent=27 // pred_check_branch
        %195 = sbr.rel (%p193) target = $region32
      $region31: #{nll_loss.1} parent=27 // pred_region
        %vm196 = vcmask 7168
        %197 = vst.msk [vmem:[%s190] sm:$0xff] %vm196, 0.0
        %198 = vst.msk [vmem:[%s190 + $0x8] sm:$0xff] %vm196, 0.0
        %199 = vst.msk [vmem:[%s190 + $0x10] sm:$0xff] %vm196, 0.0
        %200 = vst.msk [vmem:[%s190 + $0x18] sm:$0xff] %vm196, 0.0
      $region32: #{nll_loss.1} parent=27 // pred_fallthru
        _
      %v201 = vld [vmem:[%s184] sm:$0xff]
      %v202 = vld [vmem:[%s184 + $0x8] sm:$0xff]
      %v203 = vld [vmem:[%s184 + $0x10] sm:$0xff]
      %v204 = vld [vmem:[%s184 + $0x18] sm:$0xff]
      %s205 = smul.u32 %s18, 10
      %v206 = vstv %s205
      %v207 = vsub.s32 %v201, %v206
      %v208 = vsub.s32 %v202, %v206
      %v209 = vsub.s32 %v203, %v206
      %v210 = vsub.s32 %v204, %v206
      %v211 = vlaneseq
      %v212 = vand.u32 %v211, 127
      %213 = vset.pattern.permute.xlu0 0
      %214 = vperm.xlu0 %213, %v207
      %v215 = vpop.permute.xlu0 %214
      %216 = vset.pattern.permute.xlu0 0
      %217 = vperm.xlu0 %216, %v208
      %v218 = vpop.permute.xlu0 %217
      %219 = vset.pattern.permute.xlu0 0
      %220 = vperm.xlu0 %219, %v209
      %v221 = vpop.permute.xlu0 %220
      %222 = vset.pattern.permute.xlu0 0
      %223 = vperm.xlu0 %222, %v210
      %v224 = vpop.permute.xlu0 %223
      %vm225 = vcmp.eq.s32.totalorder %v212, %v215
      %vm226 = vcmp.eq.s32.totalorder %v212, %v218
      %vm227 = vcmp.eq.s32.totalorder %v212, %v221
      %vm228 = vcmp.eq.s32.totalorder %v212, %v224
      %v229 = vld [vmem:[%s178] sm:$0xff]
      %v230 = vld [vmem:[%s178 + $0x8] sm:$0xff]
      %v231 = vld [vmem:[%s178 + $0x10] sm:$0xff]
      %v232 = vld [vmem:[%s178 + $0x18] sm:$0xff]
      %v233 = vld [vmem:[%s190] sm:$0xff]
      %v234 = vld [vmem:[%s190 + $0x8] sm:$0xff]
      %v235 = vld [vmem:[%s190 + $0x10] sm:$0xff]
      %v236 = vld [vmem:[%s190 + $0x18] sm:$0xff]
      %v237 = vsel %vm225, %v229, 0.0
      %v238 = vsel %vm226, %v230, 0.0
      %v239 = vsel %vm227, %v231, 0.0
      %v240 = vsel %vm228, %v232, 0.0
      %vm241 = vcmask 80896
      %v242 = vsel %vm241, %v237, 0.0
      %243 = vadd.xlane.f32.xlu0 %v242
      %v244 = vpop.xlane.xlu0 %243
      %v245 = vsel %vm241, %v238, 0.0
      %246 = vadd.xlane.f32.xlu0 %v245
      %v247 = vpop.xlane.xlu0 %246
      %v248 = vsel %vm241, %v239, 0.0
      %249 = vadd.xlane.f32.xlu0 %v248
      %v250 = vpop.xlane.xlu0 %249
      %v251 = vsel %vm241, %v240, 0.0
      %252 = vadd.xlane.f32.xlu0 %v251
      %v253 = vpop.xlane.xlu0 %252
      %v254 = vadd.f32 %v233, %v244
      %v255 = vadd.f32 %v234, %v247
      %v256 = vadd.f32 %v235, %v250
      %v257 = vadd.f32 %v236, %v253
      %vm258 = vcmask 7168
      %259 = vst.msk [vmem:[%s190] sm:$0xff] %vm258, %v254
      %260 = vst.msk [vmem:[%s190 + $0x8] sm:$0xff] %vm258, %v255
      %261 = vst.msk [vmem:[%s190 + $0x10] sm:$0xff] %vm258, %v256
      %262 = vst.msk [vmem:[%s190 + $0x18] sm:$0xff] %vm258, %v257
      %s263 = smul.u32 4, %s17
      %p264 = scmp.lt.s32.totalorder %s263, 7
      %s265 = scalar_select %p264, %s263, 7
      %s266 = smul.addr %s265, 8
      %s267 = scalar_lea.vmem %s2, %s266
      // Predicated region
      $region33: #{nll_loss.1} parent=27 // pred_check
        %p268 = pneg %p97
      $region34: #{nll_loss.1} parent=27 // pred_check_branch
        %270 = sbr.rel (%p268) target = $region36
      $region35: #{nll_loss.1} parent=27 // pred_region
        %s271 = smul.u32 4, %s17
      $region36: #{nll_loss.1} parent=27 // pred_fallthru
        _
    $region28: #{nll_loss.1} parent=5 // pred_fallthru
      _
    %p272 = scmp.le.s32.totalorder 2, %s8
    // Predicated region
    $region37: #{nll_loss.1} parent=5 // pred_check
      %p273 = pneg %p272
    $region38: #{nll_loss.1} parent=5 // pred_check_branch
      %275 = sbr.rel (%p273) target = $region40
    $region39: #{nll_loss.1} parent=5 // pred_region
      %s276 = ssub.s32 %s8, 2
      // Predicated region
      $region41: #{nll_loss.1} parent=39 // pred_check
        %p277 = pneg %p103
      $region42: #{nll_loss.1} parent=39 // pred_check_branch
        %279 = sbr.rel (%p277) target = $region44
      $region43: #{nll_loss.1} parent=39 // pred_region
        %s280 = smul.u32 4, %s19
        %p281 = scmp.lt.s32.totalorder %s280, 7
        %s282 = scalar_select %p281, %s280, 7
        %s283 = smul.addr %s282, 8
        %s284 = scalar_lea.vmem %s2, %s283
      $region44: #{nll_loss.1} parent=39 // pred_fallthru
        _
    $region40: #{nll_loss.1} parent=5 // pred_fallthru
      _
  $region6: #{nll_loss.1} parent=0 // loop_footer
    %s12 = sadd.s32 1, %s8
  $region7: #{nll_loss.1} parent=0 // loop_footer_branch
    %7 = sbr.rel target = $region3
  $region8: #{nll_loss.1} parent=0 // loop_exit
    _

</llo_original>
